<compile_context>
chip_gen: v7x
topology: tpu7x:2x2x1
jax: 0.10.0
libtpu: 0.0.40
codegen_flags: <defaults>
</compile_context>

<pallas_src>
import functools

import numpy as np
import jax
import jax.numpy as jnp
from jax.experimental import pallas as pl
from jax.experimental.pallas import tpu as pltpu


def _round_up(n, m):
    return ((n + m - 1) // m) * m


def _esn_rollout_kernel(drive_ref, h0_ref, w_res_ref, w_ro_ref, b_ro_ref,
                        out_ref, hfin_ref, h_scr, hist_scr, *,
                        leaking_rate, tc, b_pad, total_steps, padded_steps):
    """Runs `tc` ESN steps per grid iteration; h_scr carries the state across chunks."""
    c = pl.program_id(0)

    # Initialize the carried hidden state from h0 on the first chunk only.
    @pl.when(c == 0)
    def _():
        h_scr[...] = h0_ref[...]

    # Hoisted out of the serial loop: resident recurrent weights + scalar mix factors.
    w_res = w_res_ref[...]                          # (U_pad, U_pad) f32, resident in VMEM
    a = jnp.float32(leaking_rate)
    one_minus_a = jnp.float32(1.0 - leaking_rate)
    needs_mask = padded_steps != total_steps        # static Python bool

    h = h_scr[...]                                  # (B_pad, U_pad) f32 carried state
    for i in range(tc):                             # static unroll over the time chunk
        row = i * b_pad                             # static slice offset
        pre = drive_ref[pl.ds(row, b_pad), :] + jnp.dot(
            h, w_res, preferred_element_type=jnp.float32)
        h_new = one_minus_a * h + a * jnp.tanh(pre)
        if needs_mask:
            # Freeze the state on padded (t >= T) steps so h_final matches step T exactly.
            h_new = jnp.where(c * tc + i < total_steps, h_new, h)
        hist_scr[pl.ds(row, b_pad), :] = h_new      # stash for the batched readout
        h = h_new
    h_scr[...] = h                                  # carry to the next chunk

    # Readout hoisted off the serial path: one (tc*B_pad, U) x (U, O) MXU matmul per chunk,
    # lane-dense output block.
    out_ref[...] = jnp.tanh(
        jnp.dot(hist_scr[...], w_ro_ref[...], preferred_element_type=jnp.float32)
        + b_ro_ref[...])

    # Final hidden state written once, on the last grid step.
    @pl.when(c == pl.num_programs(0) - 1)
    def _():
        hfin_ref[...] = h


def prepare_reservoir_params(w_in_t, w_res_t, w_ro_t, b_ro):
    """Pad parameters to vreg-friendly shapes ONCE, outside the jitted rollout."""
    U, O = w_ro_t.shape
    U_pad = _round_up(U, 128)
    O_pad = _round_up(O, 128)
    w_in_p = jnp.pad(w_in_t.astype(jnp.float32), ((0, 0), (0, U_pad - U)))
    # Keep the recurrent / readout weights in f32 (review correctness concern): the recurrence
    # is latency-bound, so the f32 MXU path costs ~nothing and matches the torch f32 module.
    w_res_p = jnp.pad(w_res_t.astype(jnp.float32), ((0, U_pad - U), (0, U_pad - U)))
    w_ro_p = jnp.pad(w_ro_t.astype(jnp.float32), ((0, U_pad - U), (0, O_pad - O)))
    b_ro_p = jnp.pad(b_ro.astype(jnp.float32), ((0, 0), (0, O_pad - O)))
    return w_in_p, w_res_p, w_ro_p, b_ro_p


@functools.partial(jax.jit,
                   static_argnames=("leaking_rate", "output_dim", "time_chunk"))
def reservoir_controller_forward(x_seq, h0, w_in_p, w_res_p, w_ro_p, b_ro_p, *,
                                 leaking_rate, output_dim, time_chunk=8):
    """Fused T-step ESN-controller rollout. Returns (out_seq (T,B,O), h_final (B,U))."""
    T, B, F = x_seq.shape
    U = h0.shape[1]
    U_pad = w_res_p.shape[0]
    O_pad = w_ro_p.shape[1]
    B_pad = _round_up(max(B, 8), 8)
    TC = max(1, min(int(time_chunk), T))
    T_pad = _round_up(T, TC)
    n_chunks = T_pad // TC

    # Pre-reduce the scalar drive and fold in W_in^T outside the kernel (removes the per-step
    # cross-lane reduction + broadcast from the serial recurrence; streams a lane-dense block).
    u = jnp.sum(x_seq.astype(jnp.float32), axis=-1, keepdims=True)        # (T, B, 1)
    drive = u * w_in_p                                                    # (T, B, U_pad)
    drive = jnp.pad(drive, ((0, T_pad - T), (0, B_pad - B), (0, 0)))
    drive_flat = drive.reshape(T_pad * B_pad, U_pad)                      # sublane/lane dense

    h0_p = jnp.pad(h0.astype(jnp.float32), ((0, B_pad - B), (0, U_pad - U)))

    kernel = functools.partial(
        _esn_rollout_kernel, leaking_rate=float(leaking_rate), tc=TC,
        b_pad=B_pad, total_steps=T, padded_steps=T_pad)

    # VMEM budget (Pallas double-buffers every block by default) -> explicit limit, capped for
    # v7x's 64 MiB physical VMEM.
    f32b = 4
    vmem_needed = (2 * (TC * B_pad * U_pad + TC * B_pad * O_pad           # drive / out blocks
                        + B_pad * U_pad + U_pad * U_pad + U_pad * O_pad   # h0, W_res, W_ro
                        + O_pad + B_pad * U_pad)                          # b_ro, h_final
                   + B_pad * U_pad + TC * B_pad * U_pad) * f32b           # scratch
    vmem_limit = int(min(max(vmem_needed + (4 << 20), 32 << 20), 64 << 20))
    # TODO(synk): for very large `units`, mark the resident weights pipeline_mode=pl.Buffered(1)
    #             and tile W_res^T along its output dimension instead of raising the limit.
    # NOTE: batch is too small (B_pad=8) to be worth a parallel batch axis across v7x's 2 TCs.

    flops = int(T_pad * (2 * B_pad * U_pad * U_pad
                         + 2 * B_pad * U_pad * O_pad
                         + 8 * B_pad * U_pad))
    transcendentals = int(T_pad * B_pad * (U_pad + O_pad))
    bytes_accessed = int(f32b * (drive_flat.size + T_pad * B_pad * O_pad + h0_p.size
                                 + w_res_p.size + w_ro_p.size + b_ro_p.size
                                 + B_pad * U_pad))

    out_flat, h_p = pl.pallas_call(
        kernel,
        out_shape=(
            jax.ShapeDtypeStruct((T_pad * B_pad, O_pad), jnp.float32),
            jax.ShapeDtypeStruct((B_pad, U_pad), jnp.float32),
        ),
        grid_spec=pltpu.PrefetchScalarGridSpec(
            num_scalar_prefetch=0,
            grid=(n_chunks,),
            in_specs=[
                pl.BlockSpec((TC * B_pad, U_pad), lambda c: (c, 0)),    # drive chunk (streamed)
                pl.BlockSpec((B_pad, U_pad), lambda c: (0, 0)),         # h0 (fetched once)
                pl.BlockSpec((U_pad, U_pad), lambda c: (0, 0)),         # W_res^T (resident)
                pl.BlockSpec((U_pad, O_pad), lambda c: (0, 0)),         # W_ro^T (resident)
                pl.BlockSpec((1, O_pad), lambda c: (0, 0)),             # b_ro (resident)
            ],
            out_specs=(
                pl.BlockSpec((TC * B_pad, O_pad), lambda c: (c, 0)),    # out chunk, lane-dense
                pl.BlockSpec((B_pad, U_pad), lambda c: (0, 0)),         # final hidden state
            ),
            scratch_shapes=[
                pltpu.VMEM((B_pad, U_pad), jnp.float32),                # carried h
                pltpu.VMEM((TC * B_pad, U_pad), jnp.float32),           # per-chunk h history
            ]),
        compiler_params=pltpu.CompilerParams(
            dimension_semantics=("arbitrary",),      # time recurrence is strictly sequential
            vmem_limit_bytes=vmem_limit),
        cost_estimate=pl.CostEstimate(flops=flops, transcendentals=transcendentals,
                                      bytes_accessed=bytes_accessed),
    )(drive_flat, h0_p, w_res_p, w_ro_p, b_ro_p)

    out = out_flat.reshape(T_pad, B_pad, O_pad)[:T, :B, :output_dim]
    h_final = h_p[:B, :U]
    return out, h_final


def reservoir_controller_step(x, h, w_in_p, w_res_p, w_ro_p, b_ro_p, *,
                              leaking_rate, output_dim):
    """Single-step entry matching the PyTorch module's forward(x) exactly (T=1)."""
    out_seq, h_new = reservoir_controller_forward(
        x[None], h, w_in_p, w_res_p, w_ro_p, b_ro_p,
        leaking_rate=leaking_rate, output_dim=output_dim, time_chunk=1)
    return out_seq[0], h_new


def _init_params(key, input_dim, units, output_dim, spectral_radius):
    """Deterministic parameter construction matching the module's __init__ shapes."""
    k_in, k_res, k_ro = jax.random.split(key, 3)

    # ESN input weights: (units, 1), uniform [-1, 1]; stored transposed as (1, units).
    w_in_t = jax.random.uniform(k_in, (1, units), jnp.float32, -1.0, 1.0)

    # Fixed random recurrent weights, rescaled to the requested spectral radius.
    w_res = np.asarray(jax.random.normal(k_res, (units, units), jnp.float32))
    eig_max = np.max(np.abs(np.linalg.eigvals(w_res)))
    w_res = (w_res * (spectral_radius / eig_max)).astype(np.float32)
    w_res_t = jnp.asarray(w_res.T)                              # stored as W_res^T

    # Readout (nn.Linear(units, output_dim)): weight uniform [-0.1, 0.1], bias zeros.
    w_ro_t = jax.random.uniform(k_ro, (units, output_dim), jnp.float32, -0.1, 0.1)
    b_ro = jnp.zeros((1, output_dim), jnp.float32)
    return w_in_t, w_res_t, w_ro_t, b_ro


if __name__ == "__main__":
    # Small shapes consistent with the forward pass; T steps exercise the fused recurrence.
    T, BATCH, INPUT_DIM, UNITS, OUTPUT_DIM = 8, 2, 64, 32, 2
    SPECTRAL_RADIUS, LEAKING_RATE = 1.1, 0.3

    key = jax.random.PRNGKey(0)
    k_x, k_p = jax.random.split(key)

    x_seq = jax.random.normal(k_x, (T, BATCH, INPUT_DIM), jnp.float32)
    h0 = jnp.zeros((BATCH, UNITS), jnp.float32)                 # reset() state
    w_in_t, w_res_t, w_ro_t, b_ro = _init_params(
        k_p, INPUT_DIM, UNITS, OUTPUT_DIM, SPECTRAL_RADIUS)

    # Pad / stage weights ONCE (outside the jitted rollout; reused by every call below).
    w_in_p, w_res_p, w_ro_p, b_ro_p = prepare_reservoir_params(w_in_t, w_res_t, w_ro_t, b_ro)

    out_seq, h_final = reservoir_controller_forward(
        x_seq, h0, w_in_p, w_res_p, w_ro_p, b_ro_p,
        leaking_rate=LEAKING_RATE, output_dim=OUTPUT_DIM, time_chunk=8)
    jax.block_until_ready((out_seq, h_final))

    # Single-step entry (module semantics for one forward() call).
    out_step, h_step = reservoir_controller_step(
        x_seq[0], h0, w_in_p, w_res_p, w_ro_p, b_ro_p,
        leaking_rate=LEAKING_RATE, output_dim=OUTPUT_DIM)
    jax.block_until_ready((out_step, h_step))

    # Pure-JAX f32 reference rollout (highest-precision dots), matching the torch f32 module.
    a = LEAKING_RATE
    h = h0
    outs = []
    for t in range(T):
        u = jnp.sum(x_seq[t], axis=1, keepdims=True)
        pre = u * w_in_t + jnp.dot(h, w_res_t, precision=jax.lax.Precision.HIGHEST)
        h = (1.0 - a) * h + a * jnp.tanh(pre)
        outs.append(jnp.tanh(jnp.dot(h, w_ro_t, precision=jax.lax.Precision.HIGHEST) + b_ro))
    out_ref_seq = jnp.stack(outs)

    assert out_seq.shape == (T, BATCH, OUTPUT_DIM) and h_final.shape == (BATCH, UNITS)
    # Tolerance covers possible MXU default-precision differences vs the HIGHEST-precision
    # XLA reference (values are O(0.1-1) and tanh-bounded).
    assert jnp.allclose(out_seq, out_ref_seq, atol=1e-2), "rollout output mismatch vs reference"
    assert jnp.allclose(h_final, h, atol=1e-2), "final hidden mismatch vs reference"
    assert jnp.allclose(out_step, out_ref_seq[0], atol=1e-2), "single-step output mismatch"

    print("KERNEL_OK")
</pallas_src>

<mosaic_0001>
module attributes {stable_mosaic.version = 11 : i64} {
  func.func @_esn_rollout_kernel(%arg0: i32, %arg1: memref<64x128xf32, #tpu.memory_space<vmem>>, %arg2: memref<8x128xf32, #tpu.memory_space<vmem>>, %arg3: memref<128x128xf32, #tpu.memory_space<vmem>>, %arg4: memref<128x128xf32, #tpu.memory_space<vmem>>, %arg5: memref<1x128xf32, #tpu.memory_space<vmem>>, %arg6: memref<64x128xf32, #tpu.memory_space<vmem>>, %arg7: memref<8x128xf32, #tpu.memory_space<vmem>>, %arg8: memref<8x128xf32, #tpu.memory_space<vmem>>, %arg9: memref<64x128xf32, #tpu.memory_space<vmem>>) attributes {dimension_semantics = [#tpu.dimension_semantics<arbitrary>], iteration_bounds = array<i64: 1>, scalar_prefetch = 0 : i64, scratch_operands = 2 : i64, tpu.core_type = #tpu.core_type<tc>, window_params = [{transform_indices = @transform_0, window_bounds = array<i64: 64, 128>}, {pipeline_mode = #tpu.pipeline_mode<synchronous>, transform_indices = @transform_1, window_bounds = array<i64: 8, 128>}, {pipeline_mode = #tpu.pipeline_mode<synchronous>, transform_indices = @transform_2, window_bounds = array<i64: 128, 128>}, {pipeline_mode = #tpu.pipeline_mode<synchronous>, transform_indices = @transform_3, window_bounds = array<i64: 128, 128>}, {pipeline_mode = #tpu.pipeline_mode<synchronous>, transform_indices = @transform_4, window_bounds = array<i64: 1, 128>}, {transform_indices = @transform_5, window_bounds = array<i64: 64, 128>}, {pipeline_mode = #tpu.pipeline_mode<synchronous>, transform_indices = @transform_6, window_bounds = array<i64: 8, 128>}]} {
    %c0_i32 = arith.constant 0 : i32
    %0 = arith.cmpi eq, %arg0, %c0_i32 : i32
    %1 = arith.extui %0 : i1 to i32
    %c0_i32_0 = arith.constant 0 : i32
    %2 = arith.cmpi ne, %1, %c0_i32_0 : i32
    scf.if %2 {
      %c0_65 = arith.constant 0 : index
      %c0_66 = arith.constant 0 : index
      %97 = vector.load %arg2[%c0_65, %c0_66] : memref<8x128xf32, #tpu.memory_space<vmem>>, vector<8x128xf32>
      %c0_67 = arith.constant 0 : index
      %c0_68 = arith.constant 0 : index
      %98 = vector.load %arg8[%c0_67, %c0_68] : memref<8x128xf32, #tpu.memory_space<vmem>>, vector<8x128xf32>
      tpu.vector_store %arg8[%c0_67, %c0_68], %97 {strides = array<i32>} : memref<8x128xf32, #tpu.memory_space<vmem>>, vector<8x128xf32>,
    } else {
    }
    %c0 = arith.constant 0 : index
    %c0_1 = arith.constant 0 : index
    %3 = vector.load %arg3[%c0, %c0_1] : memref<128x128xf32, #tpu.memory_space<vmem>>, vector<128x128xf32>
    %c0_2 = arith.constant 0 : index
    %c0_3 = arith.constant 0 : index
    %4 = vector.load %arg8[%c0_2, %c0_3] : memref<8x128xf32, #tpu.memory_space<vmem>>, vector<8x128xf32>
    %c0_4 = arith.constant 0 : index
    %c0_5 = arith.constant 0 : index
    %5 = vector.load %arg1[%c0_4, %c0_5] : memref<64x128xf32, #tpu.memory_space<vmem>>, vector<8x128xf32>
    %cst = arith.constant dense<0.000000e+00> : vector<8x128xf32>
    %6 = tpu.matmul %4, %3, %cst {dimension_numbers = #tpu.dot_dimension_numbers<[1], [0], [0], [1], [0, 0, 1, 1], [], []>} : vector<8x128xf32>, vector<128x128xf32>, vector<8x128xf32> -> vector<8x128xf32>
    %7 = arith.addf %5, %6 : vector<8x128xf32>
    %cst_6 = arith.constant 0.699999988 : f32
    %8 = vector.broadcast %cst_6 : f32 to vector<8x128xf32>
    %9 = arith.mulf %8, %4 : vector<8x128xf32>
    %10 = math.tanh %7 : vector<8x128xf32>
    %cst_7 = arith.constant 3.000000e-01 : f32
    %11 = vector.broadcast %cst_7 : f32 to vector<8x128xf32>
    %12 = arith.mulf %11, %10 : vector<8x128xf32>
    %13 = arith.addf %9, %12 : vector<8x128xf32>
    %c0_8 = arith.constant 0 : index
    %c0_9 = arith.constant 0 : index
    %14 = vector.load %arg9[%c0_8, %c0_9] : memref<64x128xf32, #tpu.memory_space<vmem>>, vector<8x128xf32>
    tpu.vector_store %arg9[%c0_8, %c0_9], %13 {strides = array<i32>} : memref<64x128xf32, #tpu.memory_space<vmem>>, vector<8x128xf32>,
    %c8 = arith.constant 8 : index
    %c0_10 = arith.constant 0 : index
    %15 = vector.load %arg1[%c8, %c0_10] : memref<64x128xf32, #tpu.memory_space<vmem>>, vector<8x128xf32>
    %cst_11 = arith.constant dense<0.000000e+00> : vector<8x128xf32>
    %16 = tpu.matmul %13, %3, %cst_11 {dimension_numbers = #tpu.dot_dimension_numbers<[1], [0], [0], [1], [0, 0, 1, 1], [], []>} : vector<8x128xf32>, vector<128x128xf32>, vector<8x128xf32> -> vector<8x128xf32>
    %17 = arith.addf %15, %16 : vector<8x128xf32>
    %cst_12 = arith.constant 0.699999988 : f32
    %18 = vector.broadcast %cst_12 : f32 to vector<8x128xf32>
    %19 = arith.mulf %18, %13 : vector<8x128xf32>
    %20 = math.tanh %17 : vector<8x128xf32>
    %cst_13 = arith.constant 3.000000e-01 : f32
    %21 = vector.broadcast %cst_13 : f32 to vector<8x128xf32>
    %22 = arith.mulf %21, %20 : vector<8x128xf32>
    %23 = arith.addf %19, %22 : vector<8x128xf32>
    %c8_14 = arith.constant 8 : index
    %c0_15 = arith.constant 0 : index
    %24 = vector.load %arg9[%c8_14, %c0_15] : memref<64x128xf32, #tpu.memory_space<vmem>>, vector<8x128xf32>
    tpu.vector_store %arg9[%c8_14, %c0_15], %23 {strides = array<i32>} : memref<64x128xf32, #tpu.memory_space<vmem>>, vector<8x128xf32>,
    %c16 = arith.constant 16 : index
    %c0_16 = arith.constant 0 : index
    %25 = vector.load %arg1[%c16, %c0_16] : memref<64x128xf32, #tpu.memory_space<vmem>>, vector<8x128xf32>
    %cst_17 = arith.constant dense<0.000000e+00> : vector<8x128xf32>
    %26 = tpu.matmul %23, %3, %cst_17 {dimension_numbers = #tpu.dot_dimension_numbers<[1], [0], [0], [1], [0, 0, 1, 1], [], []>} : vector<8x128xf32>, vector<128x128xf32>, vector<8x128xf32> -> vector<8x128xf32>
    %27 = arith.addf %25, %26 : vector<8x128xf32>
    %cst_18 = arith.constant 0.699999988 : f32
    %28 = vector.broadcast %cst_18 : f32 to vector<8x128xf32>
    %29 = arith.mulf %28, %23 : vector<8x128xf32>
    %30 = math.tanh %27 : vector<8x128xf32>
    %cst_19 = arith.constant 3.000000e-01 : f32
    %31 = vector.broadcast %cst_19 : f32 to vector<8x128xf32>
    %32 = arith.mulf %31, %30 : vector<8x128xf32>
    %33 = arith.addf %29, %32 : vector<8x128xf32>
    %c16_20 = arith.constant 16 : index
    %c0_21 = arith.constant 0 : index
    %34 = vector.load %arg9[%c16_20, %c0_21] : memref<64x128xf32, #tpu.memory_space<vmem>>, vector<8x128xf32>
    tpu.vector_store %arg9[%c16_20, %c0_21], %33 {strides = array<i32>} : memref<64x128xf32, #tpu.memory_space<vmem>>, vector<8x128xf32>,
    %c24 = arith.constant 24 : index
    %c0_22 = arith.constant 0 : index
    %35 = vector.load %arg1[%c24, %c0_22] : memref<64x128xf32, #tpu.memory_space<vmem>>, vector<8x128xf32>
    %cst_23 = arith.constant dense<0.000000e+00> : vector<8x128xf32>
    %36 = tpu.matmul %33, %3, %cst_23 {dimension_numbers = #tpu.dot_dimension_numbers<[1], [0], [0], [1], [0, 0, 1, 1], [], []>} : vector<8x128xf32>, vector<128x128xf32>, vector<8x128xf32> -> vector<8x128xf32>
    %37 = arith.addf %35, %36 : vector<8x128xf32>
    %cst_24 = arith.constant 0.699999988 : f32
    %38 = vector.broadcast %cst_24 : f32 to vector<8x128xf32>
    %39 = arith.mulf %38, %33 : vector<8x128xf32>
    %40 = math.tanh %37 : vector<8x128xf32>
    %cst_25 = arith.constant 3.000000e-01 : f32
    %41 = vector.broadcast %cst_25 : f32 to vector<8x128xf32>
    %42 = arith.mulf %41, %40 : vector<8x128xf32>
    %43 = arith.addf %39, %42 : vector<8x128xf32>
    %c24_26 = arith.constant 24 : index
    %c0_27 = arith.constant 0 : index
    %44 = vector.load %arg9[%c24_26, %c0_27] : memref<64x128xf32, #tpu.memory_space<vmem>>, vector<8x128xf32>
    tpu.vector_store %arg9[%c24_26, %c0_27], %43 {strides = array<i32>} : memref<64x128xf32, #tpu.memory_space<vmem>>, vector<8x128xf32>,
    %c32 = arith.constant 32 : index
    %c0_28 = arith.constant 0 : index
    %45 = vector.load %arg1[%c32, %c0_28] : memref<64x128xf32, #tpu.memory_space<vmem>>, vector<8x128xf32>
    %cst_29 = arith.constant dense<0.000000e+00> : vector<8x128xf32>
    %46 = tpu.matmul %43, %3, %cst_29 {dimension_numbers = #tpu.dot_dimension_numbers<[1], [0], [0], [1], [0, 0, 1, 1], [], []>} : vector<8x128xf32>, vector<128x128xf32>, vector<8x128xf32> -> vector<8x128xf32>
    %47 = arith.addf %45, %46 : vector<8x128xf32>
    %cst_30 = arith.constant 0.699999988 : f32
    %48 = vector.broadcast %cst_30 : f32 to vector<8x128xf32>
    %49 = arith.mulf %48, %43 : vector<8x128xf32>
    %50 = math.tanh %47 : vector<8x128xf32>
    %cst_31 = arith.constant 3.000000e-01 : f32
    %51 = vector.broadcast %cst_31 : f32 to vector<8x128xf32>
    %52 = arith.mulf %51, %50 : vector<8x128xf32>
    %53 = arith.addf %49, %52 : vector<8x128xf32>
    %c32_32 = arith.constant 32 : index
    %c0_33 = arith.constant 0 : index
    %54 = vector.load %arg9[%c32_32, %c0_33] : memref<64x128xf32, #tpu.memory_space<vmem>>, vector<8x128xf32>
    tpu.vector_store %arg9[%c32_32, %c0_33], %53 {strides = array<i32>} : memref<64x128xf32, #tpu.memory_space<vmem>>, vector<8x128xf32>,
    %c40 = arith.constant 40 : index
    %c0_34 = arith.constant 0 : index
    %55 = vector.load %arg1[%c40, %c0_34] : memref<64x128xf32, #tpu.memory_space<vmem>>, vector<8x128xf32>
    %cst_35 = arith.constant dense<0.000000e+00> : vector<8x128xf32>
    %56 = tpu.matmul %53, %3, %cst_35 {dimension_numbers = #tpu.dot_dimension_numbers<[1], [0], [0], [1], [0, 0, 1, 1], [], []>} : vector<8x128xf32>, vector<128x128xf32>, vector<8x128xf32> -> vector<8x128xf32>
    %57 = arith.addf %55, %56 : vector<8x128xf32>
    %cst_36 = arith.constant 0.699999988 : f32
    %58 = vector.broadcast %cst_36 : f32 to vector<8x128xf32>
    %59 = arith.mulf %58, %53 : vector<8x128xf32>
    %60 = math.tanh %57 : vector<8x128xf32>
    %cst_37 = arith.constant 3.000000e-01 : f32
    %61 = vector.broadcast %cst_37 : f32 to vector<8x128xf32>
    %62 = arith.mulf %61, %60 : vector<8x128xf32>
    %63 = arith.addf %59, %62 : vector<8x128xf32>
    %c40_38 = arith.constant 40 : index
    %c0_39 = arith.constant 0 : index
    %64 = vector.load %arg9[%c40_38, %c0_39] : memref<64x128xf32, #tpu.memory_space<vmem>>, vector<8x128xf32>
    tpu.vector_store %arg9[%c40_38, %c0_39], %63 {strides = array<i32>} : memref<64x128xf32, #tpu.memory_space<vmem>>, vector<8x128xf32>,
    %c48 = arith.constant 48 : index
    %c0_40 = arith.constant 0 : index
    %65 = vector.load %arg1[%c48, %c0_40] : memref<64x128xf32, #tpu.memory_space<vmem>>, vector<8x128xf32>
    %cst_41 = arith.constant dense<0.000000e+00> : vector<8x128xf32>
    %66 = tpu.matmul %63, %3, %cst_41 {dimension_numbers = #tpu.dot_dimension_numbers<[1], [0], [0], [1], [0, 0, 1, 1], [], []>} : vector<8x128xf32>, vector<128x128xf32>, vector<8x128xf32> -> vector<8x128xf32>
    %67 = arith.addf %65, %66 : vector<8x128xf32>
    %cst_42 = arith.constant 0.699999988 : f32
    %68 = vector.broadcast %cst_42 : f32 to vector<8x128xf32>
    %69 = arith.mulf %68, %63 : vector<8x128xf32>
    %70 = math.tanh %67 : vector<8x128xf32>
    %cst_43 = arith.constant 3.000000e-01 : f32
    %71 = vector.broadcast %cst_43 : f32 to vector<8x128xf32>
    %72 = arith.mulf %71, %70 : vector<8x128xf32>
    %73 = arith.addf %69, %72 : vector<8x128xf32>
    %c48_44 = arith.constant 48 : index
    %c0_45 = arith.constant 0 : index
    %74 = vector.load %arg9[%c48_44, %c0_45] : memref<64x128xf32, #tpu.memory_space<vmem>>, vector<8x128xf32>
    tpu.vector_store %arg9[%c48_44, %c0_45], %73 {strides = array<i32>} : memref<64x128xf32, #tpu.memory_space<vmem>>, vector<8x128xf32>,
    %c56 = arith.constant 56 : index
    %c0_46 = arith.constant 0 : index
    %75 = vector.load %arg1[%c56, %c0_46] : memref<64x128xf32, #tpu.memory_space<vmem>>, vector<8x128xf32>
    %cst_47 = arith.constant dense<0.000000e+00> : vector<8x128xf32>
    %76 = tpu.matmul %73, %3, %cst_47 {dimension_numbers = #tpu.dot_dimension_numbers<[1], [0], [0], [1], [0, 0, 1, 1], [], []>} : vector<8x128xf32>, vector<128x128xf32>, vector<8x128xf32> -> vector<8x128xf32>
    %77 = arith.addf %75, %76 : vector<8x128xf32>
    %cst_48 = arith.constant 0.699999988 : f32
    %78 = vector.broadcast %cst_48 : f32 to vector<8x128xf32>
    %79 = arith.mulf %78, %73 : vector<8x128xf32>
    %80 = math.tanh %77 : vector<8x128xf32>
    %cst_49 = arith.constant 3.000000e-01 : f32
    %81 = vector.broadcast %cst_49 : f32 to vector<8x128xf32>
    %82 = arith.mulf %81, %80 : vector<8x128xf32>
    %83 = arith.addf %79, %82 : vector<8x128xf32>
    %c56_50 = arith.constant 56 : index
    %c0_51 = arith.constant 0 : index
    %84 = vector.load %arg9[%c56_50, %c0_51] : memref<64x128xf32, #tpu.memory_space<vmem>>, vector<8x128xf32>
    tpu.vector_store %arg9[%c56_50, %c0_51], %83 {strides = array<i32>} : memref<64x128xf32, #tpu.memory_space<vmem>>, vector<8x128xf32>,
    %c0_52 = arith.constant 0 : index
    %c0_53 = arith.constant 0 : index
    %85 = vector.load %arg8[%c0_52, %c0_53] : memref<8x128xf32, #tpu.memory_space<vmem>>, vector<8x128xf32>
    tpu.vector_store %arg8[%c0_52, %c0_53], %83 {strides = array<i32>} : memref<8x128xf32, #tpu.memory_space<vmem>>, vector<8x128xf32>,
    %c0_54 = arith.constant 0 : index
    %c0_55 = arith.constant 0 : index
    %86 = vector.load %arg9[%c0_54, %c0_55] : memref<64x128xf32, #tpu.memory_space<vmem>>, vector<64x128xf32>
    %c0_56 = arith.constant 0 : index
    %c0_57 = arith.constant 0 : index
    %87 = vector.load %arg4[%c0_56, %c0_57] : memref<128x128xf32, #tpu.memory_space<vmem>>, vector<128x128xf32>
    %cst_58 = arith.constant dense<0.000000e+00> : vector<64x128xf32>
    %88 = tpu.matmul %86, %87, %cst_58 {dimension_numbers = #tpu.dot_dimension_numbers<[1], [0], [0], [1], [0, 0, 1, 1], [], []>} : vector<64x128xf32>, vector<128x128xf32>, vector<64x128xf32> -> vector<64x128xf32>
    %c0_59 = arith.constant 0 : index
    %c0_60 = arith.constant 0 : index
    %89 = vector.load %arg5[%c0_59, %c0_60] : memref<1x128xf32, #tpu.memory_space<vmem>>, vector<1x128xf32>
    %90 = vector.broadcast %89 : vector<1x128xf32> to vector<64x128xf32>
    %91 = arith.addf %88, %90 : vector<64x128xf32>
    %92 = math.tanh %91 : vector<64x128xf32>
    %c0_61 = arith.constant 0 : index
    %c0_62 = arith.constant 0 : index
    %93 = vector.load %arg6[%c0_61, %c0_62] : memref<64x128xf32, #tpu.memory_space<vmem>>, vector<64x128xf32>
    tpu.vector_store %arg6[%c0_61, %c0_62], %92 {strides = array<i32>} : memref<64x128xf32, #tpu.memory_space<vmem>>, vector<64x128xf32>,
    %c0_i32_63 = arith.constant 0 : i32
    %94 = arith.cmpi eq, %arg0, %c0_i32_63 : i32
    %95 = arith.extui %94 : i1 to i32
    %c0_i32_64 = arith.constant 0 : i32
    %96 = arith.cmpi ne, %95, %c0_i32_64 : i32
    scf.if %96 {
      %c0_65 = arith.constant 0 : index
      %c0_66 = arith.constant 0 : index
      %97 = vector.load %arg7[%c0_65, %c0_66] : memref<8x128xf32, #tpu.memory_space<vmem>>, vector<8x128xf32>
      tpu.vector_store %arg7[%c0_65, %c0_66], %83 {strides = array<i32>} : memref<8x128xf32, #tpu.memory_space<vmem>>, vector<8x128xf32>,
    } else {
    }
    return
  }
  func.func @transform_0(%arg0: i32) -> (i32, i32) {
    %c0_i32 = arith.constant 0 : i32
    %c0_i32_0 = arith.constant 0 : i32
    return %arg0, %c0_i32 : i32, i32
  }
  func.func @transform_1(%arg0: i32) -> (i32, i32) {
    %c0_i32 = arith.constant 0 : i32
    %c0_i32_0 = arith.constant 0 : i32
    %c0_i32_1 = arith.constant 0 : i32
    return %c0_i32, %c0_i32_0 : i32, i32
  }
  func.func @transform_2(%arg0: i32) -> (i32, i32) {
    %c0_i32 = arith.constant 0 : i32
    %c0_i32_0 = arith.constant 0 : i32
    %c0_i32_1 = arith.constant 0 : i32
    return %c0_i32, %c0_i32_0 : i32, i32
  }
  func.func @transform_3(%arg0: i32) -> (i32, i32) {
    %c0_i32 = arith.constant 0 : i32
    %c0_i32_0 = arith.constant 0 : i32
    %c0_i32_1 = arith.constant 0 : i32
    return %c0_i32, %c0_i32_0 : i32, i32
  }
  func.func @transform_4(%arg0: i32) -> (i32, i32) {
    %c0_i32 = arith.constant 0 : i32
    %c0_i32_0 = arith.constant 0 : i32
    %c0_i32_1 = arith.constant 0 : i32
    return %c0_i32, %c0_i32_0 : i32, i32
  }
  func.func @transform_5(%arg0: i32) -> (i32, i32) {
    %c0_i32 = arith.constant 0 : i32
    %c0_i32_0 = arith.constant 0 : i32
    return %arg0, %c0_i32 : i32, i32
  }
  func.func @transform_6(%arg0: i32) -> (i32, i32) {
    %c0_i32 = arith.constant 0 : i32
    %c0_i32_0 = arith.constant 0 : i32
    %c0_i32_1 = arith.constant 0 : i32
    return %c0_i32, %c0_i32_0 : i32, i32
  }
}

</mosaic_0001>

<llo_original>
// kernel: reservoir_controller_forward.1
$region0: #{reservoir_controller_forward.1}
  #allocation0 [shape = 'u32[]', space=smem, size = 0x4, offset = 0x4, fixed_abs, tag = 'smem constant byte address 0x4 - core index']
  #allocation1 [shape = 'u32[144,128]{1,0:T(1,128)}', space=vmem, size = 0x12000, scoped, tag = 'internal scratch']
  #allocation2 [shape = 'f32[8,128]{1,0:T(8,128)}', space=vmem, size = 0x1000, scoped, tag = 'scratch operand']
  #allocation3 [shape = 'f32[64,128]{1,0:T(8,128)}', space=vmem, size = 0x8000, scoped, tag = 'scratch operand']
  %s0 = inlined_call_operand.vmem [shape: f32[64,128], index: 0, kind: input, shape index: {}]
  %s1 = inlined_call_operand.vmem [shape: f32[8,128], index: 1, kind: input, shape index: {}]
  %s2 = inlined_call_operand.vmem [shape: f32[128,128], index: 2, kind: input, shape index: {}]
  %s3 = inlined_call_operand.hbm [shape: f32[128,128], index: 3, kind: input, shape index: {}]
  %s4 = inlined_call_operand.vmem [shape: f32[1,128], index: 4, kind: input, shape index: {}]
  %s5 = inlined_call_operand.vmem [shape: f32[64,128], index: 5, kind: output, shape index: {0}]
  %s6 = inlined_call_operand.vmem [shape: f32[8,128], index: 6, kind: output, shape index: {1}]
  %7 = xla_tuple %s5, %s6
  %s8 = sld [smem:[#allocation0]]
  $region50: #{reservoir_controller_forward.1} parent=0
    _
  %s10 = ssub.s32 1, %s8
  %s11 = scalar_select 0, %s10, %s8
  $region1: #{reservoir_controller_forward.1} parent=0
    #allocation4 [shape = 'u8[65536]{0}', space=vmem, size = 0x10000, scoped, tag = 'input window, operand 3, single buffered']
    #allocation5 [shape = 's32[1]{0}', space=sflag, size = 0x4, scoped, tag = 'scoped memory for reservoir_controller_forward.1']
    %12 = vsyncpa [#allocation5], 0
    // Predicated region
    $region2: #{reservoir_controller_forward.1} parent=1 // pred_check
      _
    $region3: #{reservoir_controller_forward.1} parent=1 // pred_check_branch
      %14 = sbr.rel (0) target = $region5
    $region4: #{reservoir_controller_forward.1} parent=1 // pred_region
      _
    $region5: #{reservoir_controller_forward.1} parent=1 // pred_fallthru
      _
    // Predicated region
    $region6: #{reservoir_controller_forward.1} parent=1 // pred_check
      _
    $region7: #{reservoir_controller_forward.1} parent=1 // pred_check_branch
      %16 = sbr.rel (0) target = $region9
    $region8: #{reservoir_controller_forward.1} parent=1 // pred_region
      _
    $region9: #{reservoir_controller_forward.1} parent=1 // pred_fallthru
      _
    // Predicated region
    $region10: #{reservoir_controller_forward.1} parent=1 // pred_check
      _
    $region11: #{reservoir_controller_forward.1} parent=1 // pred_check_branch
      %18 = sbr.rel (0) target = $region13
    $region12: #{reservoir_controller_forward.1} parent=1 // pred_region
      _
    $region13: #{reservoir_controller_forward.1} parent=1 // pred_fallthru
      _
    // Predicated region
    $region14: #{reservoir_controller_forward.1} parent=1 // pred_check
      _
    $region15: #{reservoir_controller_forward.1} parent=1 // pred_check_branch
      %20 = sbr.rel (0) target = $region17
    $region16: #{reservoir_controller_forward.1} parent=1 // pred_region
      %s22 = ssub.s32 2048, 2048
      %23 = vsyncadd [#allocation5], %s22
      %s24 = sshll.u32 [#allocation4], 4
      %s25 = int_to_ptr.vmem [resolvable:$true] %s24
      %30 = dma.hbm_to_vmem [thread:$0]  %s3, 2048, %s25, [#allocation5], 128, 128, 8
    $region17: #{reservoir_controller_forward.1} parent=1 // pred_fallthru
      _
    // Predicated region
    $region18: #{reservoir_controller_forward.1} parent=1 // pred_check
      _
    $region19: #{reservoir_controller_forward.1} parent=1 // pred_check_branch
      %32 = sbr.rel (0) target = $region21
    $region20: #{reservoir_controller_forward.1} parent=1 // pred_region
      _
    $region21: #{reservoir_controller_forward.1} parent=1 // pred_fallthru
      _
    // Predicated region
    $region22: #{reservoir_controller_forward.1} parent=1 // pred_check
      _
    $region23: #{reservoir_controller_forward.1} parent=1 // pred_check_branch
      %34 = sbr.rel (0) target = $region25
    $region24: #{reservoir_controller_forward.1} parent=1 // pred_region
      %35 = dma.done [#allocation5], 2048
    $region25: #{reservoir_controller_forward.1} parent=1 // pred_fallthru
      _
    %p36 = scmp.eq.s32.totalorder 0, 0
    // Predicated region
    $region26: #{reservoir_controller_forward.1} parent=1 // pred_check
      %p37 = pneg %p36
    $region27: #{reservoir_controller_forward.1} parent=1 // pred_check_branch
      %39 = sbr.rel (%p37) target = $region29
    $region28: #{reservoir_controller_forward.1} parent=1 // pred_region
      %v40 = vld [vmem:[%s1] sm:$0xff]
      %41 = vst [vmem:[#allocation2] sm:$0xff] %v40
    $region29: #{reservoir_controller_forward.1} parent=1 // pred_fallthru
      _
    %v42 = vld [vmem:[%s2] sm:$0xff]
    %v43 = vld [vmem:[%s2 + $0x8] sm:$0xff]
    %v44 = vld [vmem:[%s2 + $0x10] sm:$0xff]
    %v45 = vld [vmem:[%s2 + $0x18] sm:$0xff]
    %v46 = vld [vmem:[%s2 + $0x20] sm:$0xff]
    %v47 = vld [vmem:[%s2 + $0x28] sm:$0xff]
    %v48 = vld [vmem:[%s2 + $0x30] sm:$0xff]
    %v49 = vld [vmem:[%s2 + $0x38] sm:$0xff]
    %v50 = vld [vmem:[%s2 + $0x40] sm:$0xff]
    %v51 = vld [vmem:[%s2 + $0x48] sm:$0xff]
    %v52 = vld [vmem:[%s2 + $0x50] sm:$0xff]
    %v53 = vld [vmem:[%s2 + $0x58] sm:$0xff]
    %v54 = vld [vmem:[%s2 + $0x60] sm:$0xff]
    %v55 = vld [vmem:[%s2 + $0x68] sm:$0xff]
    %v56 = vld [vmem:[%s2 + $0x70] sm:$0xff]
    %v57 = vld [vmem:[%s2 + $0x78] sm:$0xff]
    %v58 = vld [vmem:[#allocation2] sm:$0xff]
    %v59 = vld [vmem:[%s0] sm:$0xff]
    %60 = vmatprep.subr.mxu0 0.0
    %61 = vmatpush1.msra.mxu0 %v42
    %62 = vmatprep.subr.mxu0 0.0
    %63 = vmatpush1.msra.mxu0 %v43
    %64 = vmatprep.subr.mxu0 0.0
    %65 = vmatpush1.msra.mxu0 %v44
    %66 = vmatprep.subr.mxu0 0.0
    %67 = vmatpush1.msra.mxu0 %v45
    %68 = vmatprep.subr.mxu0 0.0
    %69 = vmatpush1.msra.mxu0 %v46
    %70 = vmatprep.subr.mxu0 0.0
    %71 = vmatpush1.msra.mxu0 %v47
    %72 = vmatprep.subr.mxu0 0.0
    %73 = vmatpush1.msra.mxu0 %v48
    %74 = vmatprep.subr.mxu0 0.0
    %75 = vmatpush1.msra.mxu0 %v49
    %76 = vmatprep.subr.mxu0 0.0
    %77 = vmatpush1.msra.mxu0 %v50
    %78 = vmatprep.subr.mxu0 0.0
    %79 = vmatpush1.msra.mxu0 %v51
    %80 = vmatprep.subr.mxu0 0.0
    %81 = vmatpush1.msra.mxu0 %v52
    %82 = vmatprep.subr.mxu0 0.0
    %83 = vmatpush1.msra.mxu0 %v53
    %84 = vmatprep.subr.mxu0 0.0
    %85 = vmatpush1.msra.mxu0 %v54
    %86 = vmatprep.subr.mxu0 0.0
    %87 = vmatpush1.msra.mxu0 %v55
    %88 = vmatprep.subr.mxu0 0.0
    %89 = vmatpush1.msra.mxu0 %v56
    %90 = vmatprep.subr.mxu0 0.0
    %91 = vmatpush1.msra.mxu0 %v57
    %92 = vmatprep.subr.mxu0 0.0
    %93 = vmatpush1.msra.mxu0 0.0
    %94 = vmatprep.subr.mxu0 0.0
    %95 = vmatpush1.msra.mxu0 0.0
    %96 = vmatprep.subr.mxu0 0.0
    %97 = vmatpush1.msra.mxu0 0.0
    %98 = vmatprep.subr.mxu0 0.0
    %99 = vmatpush1.msra.mxu0 0.0
    %100 = vmatprep.subr.mxu0 0.0
    %101 = vmatpush1.msra.mxu0 0.0
    %102 = vmatprep.subr.mxu0 0.0
    %103 = vmatpush1.msra.mxu0 0.0
    %104 = vmatprep.subr.mxu0 0.0
    %105 = vmatpush1.msra.mxu0 0.0
    %106 = vmatprep.subr.mxu0 0.0
    %107 = vmatpush1.msra.mxu0 0.0
    %108 = vmatprep.subr.mxu0 0.0
    %109 = vmatpush1.msra.mxu0 0.0
    %110 = vmatprep.subr.mxu0 0.0
    %111 = vmatpush1.msra.mxu0 0.0
    %112 = vmatprep.subr.mxu0 0.0
    %113 = vmatpush1.msra.mxu0 0.0
    %114 = vmatprep.subr.mxu0 0.0
    %115 = vmatpush1.msra.mxu0 0.0
    %116 = vmatprep.subr.mxu0 0.0
    %117 = vmatpush1.msra.mxu0 0.0
    %118 = vmatprep.subr.mxu0 0.0
    %119 = vmatpush1.msra.mxu0 0.0
    %120 = vmatprep.subr.mxu0 0.0
    %121 = vmatpush1.msra.mxu0 0.0
    %122 = vmatprep.subr.mxu0 0.0
    %123 = vmatpush1.msra.mxu0 0.0
    %124 = vmatprep.mubr.f32.mxu0 0.0
    %125 = vmatmul.mubr.f32.gmra.mrb[0].mxu0 %v58
    %v126 = vpop.f32.mrb[0].mxu0
    %v127 = vadd.f32 0.0, %v126
    %v128 = vpop.f32.mrb[0].mxu0
    %129 = vdwg.mxu0
    %v130 = vadd.f32 %v59, %v127
    %v131 = vmul.f32 %v58, 0.7
    %v132 = vtanh.pop %v130
    %v133 = vmul.f32 %v132, 0.3
    %v134 = vadd.f32 %v131, %v133
    %135 = vst [vmem:[#allocation3] sm:$0xff] %v134
    %v136 = vld [vmem:[%s0 + $0x8] sm:$0xff]
    %137 = vmatprep.subr.mxu0 0.0
    %138 = vmatpush1.msra.mxu0 %v42
    %139 = vmatprep.subr.mxu0 0.0
    %140 = vmatpush1.msra.mxu0 %v43
    %141 = vmatprep.subr.mxu0 0.0
    %142 = vmatpush1.msra.mxu0 %v44
    %143 = vmatprep.subr.mxu0 0.0
    %144 = vmatpush1.msra.mxu0 %v45
    %145 = vmatprep.subr.mxu0 0.0
    %146 = vmatpush1.msra.mxu0 %v46
    %147 = vmatprep.subr.mxu0 0.0
    %148 = vmatpush1.msra.mxu0 %v47
    %149 = vmatprep.subr.mxu0 0.0
    %150 = vmatpush1.msra.mxu0 %v48
    %151 = vmatprep.subr.mxu0 0.0
    %152 = vmatpush1.msra.mxu0 %v49
    %153 = vmatprep.subr.mxu0 0.0
    %154 = vmatpush1.msra.mxu0 %v50
    %155 = vmatprep.subr.mxu0 0.0
    %156 = vmatpush1.msra.mxu0 %v51
    %157 = vmatprep.subr.mxu0 0.0
    %158 = vmatpush1.msra.mxu0 %v52
    %159 = vmatprep.subr.mxu0 0.0
    %160 = vmatpush1.msra.mxu0 %v53
    %161 = vmatprep.subr.mxu0 0.0
    %162 = vmatpush1.msra.mxu0 %v54
    %163 = vmatprep.subr.mxu0 0.0
    %164 = vmatpush1.msra.mxu0 %v55
    %165 = vmatprep.subr.mxu0 0.0
    %166 = vmatpush1.msra.mxu0 %v56
    %167 = vmatprep.subr.mxu0 0.0
    %168 = vmatpush1.msra.mxu0 %v57
    %169 = vmatprep.subr.mxu0 0.0
    %170 = vmatpush1.msra.mxu0 0.0
    %171 = vmatprep.subr.mxu0 0.0
    %172 = vmatpush1.msra.mxu0 0.0
    %173 = vmatprep.subr.mxu0 0.0
    %174 = vmatpush1.msra.mxu0 0.0
    %175 = vmatprep.subr.mxu0 0.0
    %176 = vmatpush1.msra.mxu0 0.0
    %177 = vmatprep.subr.mxu0 0.0
    %178 = vmatpush1.msra.mxu0 0.0
    %179 = vmatprep.subr.mxu0 0.0
    %180 = vmatpush1.msra.mxu0 0.0
    %181 = vmatprep.subr.mxu0 0.0
    %182 = vmatpush1.msra.mxu0 0.0
    %183 = vmatprep.subr.mxu0 0.0
    %184 = vmatpush1.msra.mxu0 0.0
    %185 = vmatprep.subr.mxu0 0.0
    %186 = vmatpush1.msra.mxu0 0.0
    %187 = vmatprep.subr.mxu0 0.0
    %188 = vmatpush1.msra.mxu0 0.0
    %189 = vmatprep.subr.mxu0 0.0
    %190 = vmatpush1.msra.mxu0 0.0
    %191 = vmatprep.subr.mxu0 0.0
    %192 = vmatpush1.msra.mxu0 0.0
    %193 = vmatprep.subr.mxu0 0.0
    %194 = vmatpush1.msra.mxu0 0.0
    %195 = vmatprep.subr.mxu0 0.0
    %196 = vmatpush1.msra.mxu0 0.0
    %197 = vmatprep.subr.mxu0 0.0
    %198 = vmatpush1.msra.mxu0 0.0
    %199 = vmatprep.subr.mxu0 0.0
    %200 = vmatpush1.msra.mxu0 0.0
    %201 = vmatprep.mubr.f32.mxu0 0.0
    %202 = vmatmul.mubr.f32.gmra.mrb[0].mxu0 %v134
    %v203 = vpop.f32.mrb[0].mxu0
    %v204 = vadd.f32 0.0, %v203
    %v205 = vpop.f32.mrb[0].mxu0
    %206 = vdwg.mxu0
    %v207 = vadd.f32 %v136, %v204
    %v208 = vmul.f32 %v134, 0.7
    %v209 = vtanh.pop %v207
    %v210 = vmul.f32 %v209, 0.3
    %v211 = vadd.f32 %v208, %v210
    %212 = vst [vmem:[#allocation3 + $0x8] sm:$0xff] %v211
    %v213 = vld [vmem:[%s0 + $0x10] sm:$0xff]
    %214 = vmatprep.subr.mxu0 0.0
    %215 = vmatpush1.msra.mxu0 %v42
    %216 = vmatprep.subr.mxu0 0.0
    %217 = vmatpush1.msra.mxu0 %v43
    %218 = vmatprep.subr.mxu0 0.0
    %219 = vmatpush1.msra.mxu0 %v44
    %220 = vmatprep.subr.mxu0 0.0
    %221 = vmatpush1.msra.mxu0 %v45
    %222 = vmatprep.subr.mxu0 0.0
    %223 = vmatpush1.msra.mxu0 %v46
    %224 = vmatprep.subr.mxu0 0.0
    %225 = vmatpush1.msra.mxu0 %v47
    %226 = vmatprep.subr.mxu0 0.0
    %227 = vmatpush1.msra.mxu0 %v48
    %228 = vmatprep.subr.mxu0 0.0
    %229 = vmatpush1.msra.mxu0 %v49
    %230 = vmatprep.subr.mxu0 0.0
    %231 = vmatpush1.msra.mxu0 %v50
    %232 = vmatprep.subr.mxu0 0.0
    %233 = vmatpush1.msra.mxu0 %v51
    %234 = vmatprep.subr.mxu0 0.0
    %235 = vmatpush1.msra.mxu0 %v52
    %236 = vmatprep.subr.mxu0 0.0
    %237 = vmatpush1.msra.mxu0 %v53
    %238 = vmatprep.subr.mxu0 0.0
    %239 = vmatpush1.msra.mxu0 %v54
    %240 = vmatprep.subr.mxu0 0.0
    %241 = vmatpush1.msra.mxu0 %v55
    %242 = vmatprep.subr.mxu0 0.0
    %243 = vmatpush1.msra.mxu0 %v56
    %244 = vmatprep.subr.mxu0 0.0
    %245 = vmatpush1.msra.mxu0 %v57
    %246 = vmatprep.subr.mxu0 0.0
    %247 = vmatpush1.msra.mxu0 0.0
    %248 = vmatprep.subr.mxu0 0.0
    %249 = vmatpush1.msra.mxu0 0.0
    %250 = vmatprep.subr.mxu0 0.0
    %251 = vmatpush1.msra.mxu0 0.0
    %252 = vmatprep.subr.mxu0 0.0
    %253 = vmatpush1.msra.mxu0 0.0
    %254 = vmatprep.subr.mxu0 0.0
    %255 = vmatpush1.msra.mxu0 0.0
    %256 = vmatprep.subr.mxu0 0.0
    %257 = vmatpush1.msra.mxu0 0.0
    %258 = vmatprep.subr.mxu0 0.0
    %259 = vmatpush1.msra.mxu0 0.0
    %260 = vmatprep.subr.mxu0 0.0
    %261 = vmatpush1.msra.mxu0 0.0
    %262 = vmatprep.subr.mxu0 0.0
    %263 = vmatpush1.msra.mxu0 0.0
    %264 = vmatprep.subr.mxu0 0.0
    %265 = vmatpush1.msra.mxu0 0.0
    %266 = vmatprep.subr.mxu0 0.0
    %267 = vmatpush1.msra.mxu0 0.0
    %268 = vmatprep.subr.mxu0 0.0
    %269 = vmatpush1.msra.mxu0 0.0
    %270 = vmatprep.subr.mxu0 0.0
    %271 = vmatpush1.msra.mxu0 0.0
    %272 = vmatprep.subr.mxu0 0.0
    %273 = vmatpush1.msra.mxu0 0.0
    %274 = vmatprep.subr.mxu0 0.0
    %275 = vmatpush1.msra.mxu0 0.0
    %276 = vmatprep.subr.mxu0 0.0
    %277 = vmatpush1.msra.mxu0 0.0
    %278 = vmatprep.mubr.f32.mxu0 0.0
    %279 = vmatmul.mubr.f32.gmra.mrb[0].mxu0 %v211
    %v280 = vpop.f32.mrb[0].mxu0
    %v281 = vadd.f32 0.0, %v280
    %v282 = vpop.f32.mrb[0].mxu0
    %283 = vdwg.mxu0
    %v284 = vadd.f32 %v213, %v281
    %v285 = vmul.f32 %v211, 0.7
    %v286 = vtanh.pop %v284
    %v287 = vmul.f32 %v286, 0.3
    %v288 = vadd.f32 %v285, %v287
    %289 = vst [vmem:[#allocation3 + $0x10] sm:$0xff] %v288
    %v290 = vld [vmem:[%s0 + $0x18] sm:$0xff]
    %291 = vmatprep.subr.mxu0 0.0
    %292 = vmatpush1.msra.mxu0 %v42
    %293 = vmatprep.subr.mxu0 0.0
    %294 = vmatpush1.msra.mxu0 %v43
    %295 = vmatprep.subr.mxu0 0.0
    %296 = vmatpush1.msra.mxu0 %v44
    %297 = vmatprep.subr.mxu0 0.0
    %298 = vmatpush1.msra.mxu0 %v45
    %299 = vmatprep.subr.mxu0 0.0
    %300 = vmatpush1.msra.mxu0 %v46
    %301 = vmatprep.subr.mxu0 0.0
    %302 = vmatpush1.msra.mxu0 %v47
    %303 = vmatprep.subr.mxu0 0.0
    %304 = vmatpush1.msra.mxu0 %v48
    %305 = vmatprep.subr.mxu0 0.0
    %306 = vmatpush1.msra.mxu0 %v49
    %307 = vmatprep.subr.mxu0 0.0
    %308 = vmatpush1.msra.mxu0 %v50
    %309 = vmatprep.subr.mxu0 0.0
    %310 = vmatpush1.msra.mxu0 %v51
    %311 = vmatprep.subr.mxu0 0.0
    %312 = vmatpush1.msra.mxu0 %v52
    %313 = vmatprep.subr.mxu0 0.0
    %314 = vmatpush1.msra.mxu0 %v53
    %315 = vmatprep.subr.mxu0 0.0
    %316 = vmatpush1.msra.mxu0 %v54
    %317 = vmatprep.subr.mxu0 0.0
    %318 = vmatpush1.msra.mxu0 %v55
    %319 = vmatprep.subr.mxu0 0.0
    %320 = vmatpush1.msra.mxu0 %v56
    %321 = vmatprep.subr.mxu0 0.0
    %322 = vmatpush1.msra.mxu0 %v57
    %323 = vmatprep.subr.mxu0 0.0
    %324 = vmatpush1.msra.mxu0 0.0
    %325 = vmatprep.subr.mxu0 0.0
    %326 = vmatpush1.msra.mxu0 0.0
    %327 = vmatprep.subr.mxu0 0.0
    %328 = vmatpush1.msra.mxu0 0.0
    %329 = vmatprep.subr.mxu0 0.0
    %330 = vmatpush1.msra.mxu0 0.0
    %331 = vmatprep.subr.mxu0 0.0
    %332 = vmatpush1.msra.mxu0 0.0
    %333 = vmatprep.subr.mxu0 0.0
    %334 = vmatpush1.msra.mxu0 0.0
    %335 = vmatprep.subr.mxu0 0.0
    %336 = vmatpush1.msra.mxu0 0.0
    %337 = vmatprep.subr.mxu0 0.0
    %338 = vmatpush1.msra.mxu0 0.0
    %339 = vmatprep.subr.mxu0 0.0
    %340 = vmatpush1.msra.mxu0 0.0
    %341 = vmatprep.subr.mxu0 0.0
    %342 = vmatpush1.msra.mxu0 0.0
    %343 = vmatprep.subr.mxu0 0.0
    %344 = vmatpush1.msra.mxu0 0.0
    %345 = vmatprep.subr.mxu0 0.0
    %346 = vmatpush1.msra.mxu0 0.0
    %347 = vmatprep.subr.mxu0 0.0
    %348 = vmatpush1.msra.mxu0 0.0
    %349 = vmatprep.subr.mxu0 0.0
    %350 = vmatpush1.msra.mxu0 0.0
    %351 = vmatprep.subr.mxu0 0.0
    %352 = vmatpush1.msra.mxu0 0.0
    %353 = vmatprep.subr.mxu0 0.0
    %354 = vmatpush1.msra.mxu0 0.0
    %355 = vmatprep.mubr.f32.mxu0 0.0
    %356 = vmatmul.mubr.f32.gmra.mrb[0].mxu0 %v288
    %v357 = vpop.f32.mrb[0].mxu0
    %v358 = vadd.f32 0.0, %v357
    %v359 = vpop.f32.mrb[0].mxu0
    %360 = vdwg.mxu0
    %v361 = vadd.f32 %v290, %v358
    %v362 = vmul.f32 %v288, 0.7
    %v363 = vtanh.pop %v361
    %v364 = vmul.f32 %v363, 0.3
    %v365 = vadd.f32 %v362, %v364
    %366 = vst [vmem:[#allocation3 + $0x18] sm:$0xff] %v365
    %v367 = vld [vmem:[%s0 + $0x20] sm:$0xff]
    %368 = vmatprep.subr.mxu0 0.0
    %369 = vmatpush1.msra.mxu0 %v42
    %370 = vmatprep.subr.mxu0 0.0
    %371 = vmatpush1.msra.mxu0 %v43
    %372 = vmatprep.subr.mxu0 0.0
    %373 = vmatpush1.msra.mxu0 %v44
    %374 = vmatprep.subr.mxu0 0.0
    %375 = vmatpush1.msra.mxu0 %v45
    %376 = vmatprep.subr.mxu0 0.0
    %377 = vmatpush1.msra.mxu0 %v46
    %378 = vmatprep.subr.mxu0 0.0
    %379 = vmatpush1.msra.mxu0 %v47
    %380 = vmatprep.subr.mxu0 0.0
    %381 = vmatpush1.msra.mxu0 %v48
    %382 = vmatprep.subr.mxu0 0.0
    %383 = vmatpush1.msra.mxu0 %v49
    %384 = vmatprep.subr.mxu0 0.0
    %385 = vmatpush1.msra.mxu0 %v50
    %386 = vmatprep.subr.mxu0 0.0
    %387 = vmatpush1.msra.mxu0 %v51
    %388 = vmatprep.subr.mxu0 0.0
    %389 = vmatpush1.msra.mxu0 %v52
    %390 = vmatprep.subr.mxu0 0.0
    %391 = vmatpush1.msra.mxu0 %v53
    %392 = vmatprep.subr.mxu0 0.0
    %393 = vmatpush1.msra.mxu0 %v54
    %394 = vmatprep.subr.mxu0 0.0
    %395 = vmatpush1.msra.mxu0 %v55
    %396 = vmatprep.subr.mxu0 0.0
    %397 = vmatpush1.msra.mxu0 %v56
    %398 = vmatprep.subr.mxu0 0.0
    %399 = vmatpush1.msra.mxu0 %v57
    %400 = vmatprep.subr.mxu0 0.0
    %401 = vmatpush1.msra.mxu0 0.0
    %402 = vmatprep.subr.mxu0 0.0
    %403 = vmatpush1.msra.mxu0 0.0
    %404 = vmatprep.subr.mxu0 0.0
    %405 = vmatpush1.msra.mxu0 0.0
    %406 = vmatprep.subr.mxu0 0.0
    %407 = vmatpush1.msra.mxu0 0.0
    %408 = vmatprep.subr.mxu0 0.0
    %409 = vmatpush1.msra.mxu0 0.0
    %410 = vmatprep.subr.mxu0 0.0
    %411 = vmatpush1.msra.mxu0 0.0
    %412 = vmatprep.subr.mxu0 0.0
    %413 = vmatpush1.msra.mxu0 0.0
    %414 = vmatprep.subr.mxu0 0.0
    %415 = vmatpush1.msra.mxu0 0.0
    %416 = vmatprep.subr.mxu0 0.0
    %417 = vmatpush1.msra.mxu0 0.0
    %418 = vmatprep.subr.mxu0 0.0
    %419 = vmatpush1.msra.mxu0 0.0
    %420 = vmatprep.subr.mxu0 0.0
    %421 = vmatpush1.msra.mxu0 0.0
    %422 = vmatprep.subr.mxu0 0.0
    %423 = vmatpush1.msra.mxu0 0.0
    %424 = vmatprep.subr.mxu0 0.0
    %425 = vmatpush1.msra.mxu0 0.0
    %426 = vmatprep.subr.mxu0 0.0
    %427 = vmatpush1.msra.mxu0 0.0
    %428 = vmatprep.subr.mxu0 0.0
    %429 = vmatpush1.msra.mxu0 0.0
    %430 = vmatprep.subr.mxu0 0.0
    %431 = vmatpush1.msra.mxu0 0.0
    %432 = vmatprep.mubr.f32.mxu0 0.0
    %433 = vmatmul.mubr.f32.gmra.mrb[0].mxu0 %v365
    %v434 = vpop.f32.mrb[0].mxu0
    %v435 = vadd.f32 0.0, %v434
    %v436 = vpop.f32.mrb[0].mxu0
    %437 = vdwg.mxu0
    %v438 = vadd.f32 %v367, %v435
    %v439 = vmul.f32 %v365, 0.7
    %v440 = vtanh.pop %v438
    %v441 = vmul.f32 %v440, 0.3
    %v442 = vadd.f32 %v439, %v441
    %443 = vst [vmem:[#allocation3 + $0x20] sm:$0xff] %v442
    %v444 = vld [vmem:[%s0 + $0x28] sm:$0xff]
    %445 = vmatprep.subr.mxu0 0.0
    %446 = vmatpush1.msra.mxu0 %v42
    %447 = vmatprep.subr.mxu0 0.0
    %448 = vmatpush1.msra.mxu0 %v43
    %449 = vmatprep.subr.mxu0 0.0
    %450 = vmatpush1.msra.mxu0 %v44
    %451 = vmatprep.subr.mxu0 0.0
    %452 = vmatpush1.msra.mxu0 %v45
    %453 = vmatprep.subr.mxu0 0.0
    %454 = vmatpush1.msra.mxu0 %v46
    %455 = vmatprep.subr.mxu0 0.0
    %456 = vmatpush1.msra.mxu0 %v47
    %457 = vmatprep.subr.mxu0 0.0
    %458 = vmatpush1.msra.mxu0 %v48
    %459 = vmatprep.subr.mxu0 0.0
    %460 = vmatpush1.msra.mxu0 %v49
    %461 = vmatprep.subr.mxu0 0.0
    %462 = vmatpush1.msra.mxu0 %v50
    %463 = vmatprep.subr.mxu0 0.0
    %464 = vmatpush1.msra.mxu0 %v51
    %465 = vmatprep.subr.mxu0 0.0
    %466 = vmatpush1.msra.mxu0 %v52
    %467 = vmatprep.subr.mxu0 0.0
    %468 = vmatpush1.msra.mxu0 %v53
    %469 = vmatprep.subr.mxu0 0.0
    %470 = vmatpush1.msra.mxu0 %v54
    %471 = vmatprep.subr.mxu0 0.0
    %472 = vmatpush1.msra.mxu0 %v55
    %473 = vmatprep.subr.mxu0 0.0
    %474 = vmatpush1.msra.mxu0 %v56
    %475 = vmatprep.subr.mxu0 0.0
    %476 = vmatpush1.msra.mxu0 %v57
    %477 = vmatprep.subr.mxu0 0.0
    %478 = vmatpush1.msra.mxu0 0.0
    %479 = vmatprep.subr.mxu0 0.0
    %480 = vmatpush1.msra.mxu0 0.0
    %481 = vmatprep.subr.mxu0 0.0
    %482 = vmatpush1.msra.mxu0 0.0
    %483 = vmatprep.subr.mxu0 0.0
    %484 = vmatpush1.msra.mxu0 0.0
    %485 = vmatprep.subr.mxu0 0.0
    %486 = vmatpush1.msra.mxu0 0.0
    %487 = vmatprep.subr.mxu0 0.0
    %488 = vmatpush1.msra.mxu0 0.0
    %489 = vmatprep.subr.mxu0 0.0
    %490 = vmatpush1.msra.mxu0 0.0
    %491 = vmatprep.subr.mxu0 0.0
    %492 = vmatpush1.msra.mxu0 0.0
    %493 = vmatprep.subr.mxu0 0.0
    %494 = vmatpush1.msra.mxu0 0.0
    %495 = vmatprep.subr.mxu0 0.0
    %496 = vmatpush1.msra.mxu0 0.0
    %497 = vmatprep.subr.mxu0 0.0
    %498 = vmatpush1.msra.mxu0 0.0
    %499 = vmatprep.subr.mxu0 0.0
    %500 = vmatpush1.msra.mxu0 0.0
    %501 = vmatprep.subr.mxu0 0.0
    %502 = vmatpush1.msra.mxu0 0.0
    %503 = vmatprep.subr.mxu0 0.0
    %504 = vmatpush1.msra.mxu0 0.0
    %505 = vmatprep.subr.mxu0 0.0
    %506 = vmatpush1.msra.mxu0 0.0
    %507 = vmatprep.subr.mxu0 0.0
    %508 = vmatpush1.msra.mxu0 0.0
    %509 = vmatprep.mubr.f32.mxu0 0.0
    %510 = vmatmul.mubr.f32.gmra.mrb[0].mxu0 %v442
    %v511 = vpop.f32.mrb[0].mxu0
    %v512 = vadd.f32 0.0, %v511
    %v513 = vpop.f32.mrb[0].mxu0
    %514 = vdwg.mxu0
    %v515 = vadd.f32 %v444, %v512
    %v516 = vmul.f32 %v442, 0.7
    %v517 = vtanh.pop %v515
    %v518 = vmul.f32 %v517, 0.3
    %v519 = vadd.f32 %v516, %v518
    %520 = vst [vmem:[#allocation3 + $0x28] sm:$0xff] %v519
    %v521 = vld [vmem:[%s0 + $0x30] sm:$0xff]
    %522 = vmatprep.subr.mxu0 0.0
    %523 = vmatpush1.msra.mxu0 %v42
    %524 = vmatprep.subr.mxu0 0.0
    %525 = vmatpush1.msra.mxu0 %v43
    %526 = vmatprep.subr.mxu0 0.0
    %527 = vmatpush1.msra.mxu0 %v44
    %528 = vmatprep.subr.mxu0 0.0
    %529 = vmatpush1.msra.mxu0 %v45
    %530 = vmatprep.subr.mxu0 0.0
    %531 = vmatpush1.msra.mxu0 %v46
    %532 = vmatprep.subr.mxu0 0.0
    %533 = vmatpush1.msra.mxu0 %v47
    %534 = vmatprep.subr.mxu0 0.0
    %535 = vmatpush1.msra.mxu0 %v48
    %536 = vmatprep.subr.mxu0 0.0
    %537 = vmatpush1.msra.mxu0 %v49
    %538 = vmatprep.subr.mxu0 0.0
    %539 = vmatpush1.msra.mxu0 %v50
    %540 = vmatprep.subr.mxu0 0.0
    %541 = vmatpush1.msra.mxu0 %v51
    %542 = vmatprep.subr.mxu0 0.0
    %543 = vmatpush1.msra.mxu0 %v52
    %544 = vmatprep.subr.mxu0 0.0
    %545 = vmatpush1.msra.mxu0 %v53
    %546 = vmatprep.subr.mxu0 0.0
    %547 = vmatpush1.msra.mxu0 %v54
    %548 = vmatprep.subr.mxu0 0.0
    %549 = vmatpush1.msra.mxu0 %v55
    %550 = vmatprep.subr.mxu0 0.0
    %551 = vmatpush1.msra.mxu0 %v56
    %552 = vmatprep.subr.mxu0 0.0
    %553 = vmatpush1.msra.mxu0 %v57
    %554 = vmatprep.subr.mxu0 0.0
    %555 = vmatpush1.msra.mxu0 0.0
    %556 = vmatprep.subr.mxu0 0.0
    %557 = vmatpush1.msra.mxu0 0.0
    %558 = vmatprep.subr.mxu0 0.0
    %559 = vmatpush1.msra.mxu0 0.0
    %560 = vmatprep.subr.mxu0 0.0
    %561 = vmatpush1.msra.mxu0 0.0
    %562 = vmatprep.subr.mxu0 0.0
    %563 = vmatpush1.msra.mxu0 0.0
    %564 = vmatprep.subr.mxu0 0.0
    %565 = vmatpush1.msra.mxu0 0.0
    %566 = vmatprep.subr.mxu0 0.0
    %567 = vmatpush1.msra.mxu0 0.0
    %568 = vmatprep.subr.mxu0 0.0
    %569 = vmatpush1.msra.mxu0 0.0
    %570 = vmatprep.subr.mxu0 0.0
    %571 = vmatpush1.msra.mxu0 0.0
    %572 = vmatprep.subr.mxu0 0.0
    %573 = vmatpush1.msra.mxu0 0.0
    %574 = vmatprep.subr.mxu0 0.0
    %575 = vmatpush1.msra.mxu0 0.0
    %576 = vmatprep.subr.mxu0 0.0
    %577 = vmatpush1.msra.mxu0 0.0
    %578 = vmatprep.subr.mxu0 0.0
    %579 = vmatpush1.msra.mxu0 0.0
    %580 = vmatprep.subr.mxu0 0.0
    %581 = vmatpush1.msra.mxu0 0.0
    %582 = vmatprep.subr.mxu0 0.0
    %583 = vmatpush1.msra.mxu0 0.0
    %584 = vmatprep.subr.mxu0 0.0
    %585 = vmatpush1.msra.mxu0 0.0
    %586 = vmatprep.mubr.f32.mxu0 0.0
    %587 = vmatmul.mubr.f32.gmra.mrb[0].mxu0 %v519
    %v588 = vpop.f32.mrb[0].mxu0
    %v589 = vadd.f32 0.0, %v588
    %v590 = vpop.f32.mrb[0].mxu0
    %591 = vdwg.mxu0
    %v592 = vadd.f32 %v521, %v589
    %v593 = vmul.f32 %v519, 0.7
    %v594 = vtanh.pop %v592
    %v595 = vmul.f32 %v594, 0.3
    %v596 = vadd.f32 %v593, %v595
    %597 = vst [vmem:[#allocation3 + $0x30] sm:$0xff] %v596
    %v598 = vld [vmem:[%s0 + $0x38] sm:$0xff]
    %599 = vmatprep.subr.mxu0 0.0
    %600 = vmatpush1.msra.mxu0 %v42
    %601 = vmatprep.subr.mxu0 0.0
    %602 = vmatpush1.msra.mxu0 %v43
    %603 = vmatprep.subr.mxu0 0.0
    %604 = vmatpush1.msra.mxu0 %v44
    %605 = vmatprep.subr.mxu0 0.0
    %606 = vmatpush1.msra.mxu0 %v45
    %607 = vmatprep.subr.mxu0 0.0
    %608 = vmatpush1.msra.mxu0 %v46
    %609 = vmatprep.subr.mxu0 0.0
    %610 = vmatpush1.msra.mxu0 %v47
    %611 = vmatprep.subr.mxu0 0.0
    %612 = vmatpush1.msra.mxu0 %v48
    %613 = vmatprep.subr.mxu0 0.0
    %614 = vmatpush1.msra.mxu0 %v49
    %615 = vmatprep.subr.mxu0 0.0
    %616 = vmatpush1.msra.mxu0 %v50
    %617 = vmatprep.subr.mxu0 0.0
    %618 = vmatpush1.msra.mxu0 %v51
    %619 = vmatprep.subr.mxu0 0.0
    %620 = vmatpush1.msra.mxu0 %v52
    %621 = vmatprep.subr.mxu0 0.0
    %622 = vmatpush1.msra.mxu0 %v53
    %623 = vmatprep.subr.mxu0 0.0
    %624 = vmatpush1.msra.mxu0 %v54
    %625 = vmatprep.subr.mxu0 0.0
    %626 = vmatpush1.msra.mxu0 %v55
    %627 = vmatprep.subr.mxu0 0.0
    %628 = vmatpush1.msra.mxu0 %v56
    %629 = vmatprep.subr.mxu0 0.0
    %630 = vmatpush1.msra.mxu0 %v57
    %631 = vmatprep.subr.mxu0 0.0
    %632 = vmatpush1.msra.mxu0 0.0
    %633 = vmatprep.subr.mxu0 0.0
    %634 = vmatpush1.msra.mxu0 0.0
    %635 = vmatprep.subr.mxu0 0.0
    %636 = vmatpush1.msra.mxu0 0.0
    %637 = vmatprep.subr.mxu0 0.0
    %638 = vmatpush1.msra.mxu0 0.0
    %639 = vmatprep.subr.mxu0 0.0
    %640 = vmatpush1.msra.mxu0 0.0
    %641 = vmatprep.subr.mxu0 0.0
    %642 = vmatpush1.msra.mxu0 0.0
    %643 = vmatprep.subr.mxu0 0.0
    %644 = vmatpush1.msra.mxu0 0.0
    %645 = vmatprep.subr.mxu0 0.0
    %646 = vmatpush1.msra.mxu0 0.0
    %647 = vmatprep.subr.mxu0 0.0
    %648 = vmatpush1.msra.mxu0 0.0
    %649 = vmatprep.subr.mxu0 0.0
    %650 = vmatpush1.msra.mxu0 0.0
    %651 = vmatprep.subr.mxu0 0.0
    %652 = vmatpush1.msra.mxu0 0.0
    %653 = vmatprep.subr.mxu0 0.0
    %654 = vmatpush1.msra.mxu0 0.0
    %655 = vmatprep.subr.mxu0 0.0
    %656 = vmatpush1.msra.mxu0 0.0
    %657 = vmatprep.subr.mxu0 0.0
    %658 = vmatpush1.msra.mxu0 0.0
    %659 = vmatprep.subr.mxu0 0.0
    %660 = vmatpush1.msra.mxu0 0.0
    %661 = vmatprep.subr.mxu0 0.0
    %662 = vmatpush1.msra.mxu0 0.0
    %663 = vmatprep.mubr.f32.mxu0 0.0
    %664 = vmatmul.mubr.f32.gmra.mrb[0].mxu0 %v596
    %v665 = vpop.f32.mrb[0].mxu0
    %v666 = vadd.f32 0.0, %v665
    %v667 = vpop.f32.mrb[0].mxu0
    %668 = vdwg.mxu0
    %v669 = vadd.f32 %v598, %v666
    %v670 = vmul.f32 %v596, 0.7
    %v671 = vtanh.pop %v669
    %v672 = vmul.f32 %v671, 0.3
    %v673 = vadd.f32 %v670, %v672
    %674 = vst [vmem:[#allocation3 + $0x38] sm:$0xff] %v673
    %675 = vst [vmem:[#allocation2] sm:$0xff] %v673
    %v676 = vld [vmem:[#allocation3] sm:$0xff]
    %v677 = vld [vmem:[#allocation3 + $0x8] sm:$0xff]
    %v678 = vld [vmem:[#allocation3 + $0x10] sm:$0xff]
    %v679 = vld [vmem:[#allocation3 + $0x18] sm:$0xff]
    %v680 = vld [vmem:[#allocation3 + $0x20] sm:$0xff]
    %v681 = vld [vmem:[#allocation3 + $0x28] sm:$0xff]
    %v682 = vld [vmem:[#allocation3 + $0x30] sm:$0xff]
    %v683 = vld [vmem:[#allocation3 + $0x38] sm:$0xff]
    %v684 = vld [vmem:[#allocation4] sm:$0xff]
    %v685 = vld [vmem:[#allocation4 + $0x8] sm:$0xff]
    %v686 = vld [vmem:[#allocation4 + $0x10] sm:$0xff]
    %v687 = vld [vmem:[#allocation4 + $0x18] sm:$0xff]
    %v688 = vld [vmem:[#allocation4 + $0x20] sm:$0xff]
    %v689 = vld [vmem:[#allocation4 + $0x28] sm:$0xff]
    %v690 = vld [vmem:[#allocation4 + $0x30] sm:$0xff]
    %v691 = vld [vmem:[#allocation4 + $0x38] sm:$0xff]
    %v692 = vld [vmem:[#allocation4 + $0x40] sm:$0xff]
    %v693 = vld [vmem:[#allocation4 + $0x48] sm:$0xff]
    %v694 = vld [vmem:[#allocation4 + $0x50] sm:$0xff]
    %v695 = vld [vmem:[#allocation4 + $0x58] sm:$0xff]
    %v696 = vld [vmem:[#allocation4 + $0x60] sm:$0xff]
    %v697 = vld [vmem:[#allocation4 + $0x68] sm:$0xff]
    %v698 = vld [vmem:[#allocation4 + $0x70] sm:$0xff]
    %v699 = vld [vmem:[#allocation4 + $0x78] sm:$0xff]
    %v700 = vld [vmem:[%s4] sm:$0x1]
    %v702 = vlaneseq
    %v703 = vshrl.u32 %v702, 7
    %v704 = vsub.s32 0, %v703
    %v705 = vrot.slane %v700, %v704
    %707 = vmatprep.subr.mxu0 0.0
    %708 = vmatpush1.msra.mxu0 %v684
    %709 = vmatprep.subr.mxu0 0.0
    %710 = vmatpush1.msra.mxu0 %v685
    %711 = vmatprep.subr.mxu0 0.0
    %712 = vmatpush1.msra.mxu0 %v686
    %713 = vmatprep.subr.mxu0 0.0
    %714 = vmatpush1.msra.mxu0 %v687
    %715 = vmatprep.subr.mxu0 0.0
    %716 = vmatpush1.msra.mxu0 %v688
    %717 = vmatprep.subr.mxu0 0.0
    %718 = vmatpush1.msra.mxu0 %v689
    %719 = vmatprep.subr.mxu0 0.0
    %720 = vmatpush1.msra.mxu0 %v690
    %721 = vmatprep.subr.mxu0 0.0
    %722 = vmatpush1.msra.mxu0 %v691
    %723 = vmatprep.subr.mxu0 0.0
    %724 = vmatpush1.msra.mxu0 %v692
    %725 = vmatprep.subr.mxu0 0.0
    %726 = vmatpush1.msra.mxu0 %v693
    %727 = vmatprep.subr.mxu0 0.0
    %728 = vmatpush1.msra.mxu0 %v694
    %729 = vmatprep.subr.mxu0 0.0
    %730 = vmatpush1.msra.mxu0 %v695
    %731 = vmatprep.subr.mxu0 0.0
    %732 = vmatpush1.msra.mxu0 %v696
    %733 = vmatprep.subr.mxu0 0.0
    %734 = vmatpush1.msra.mxu0 %v697
    %735 = vmatprep.subr.mxu0 0.0
    %736 = vmatpush1.msra.mxu0 %v698
    %737 = vmatprep.subr.mxu0 0.0
    %738 = vmatpush1.msra.mxu0 %v699
    %739 = vmatprep.subr.mxu0 0.0
    %740 = vmatpush1.msra.mxu0 0.0
    %741 = vmatprep.subr.mxu0 0.0
    %742 = vmatpush1.msra.mxu0 0.0
    %743 = vmatprep.subr.mxu0 0.0
    %744 = vmatpush1.msra.mxu0 0.0
    %745 = vmatprep.subr.mxu0 0.0
    %746 = vmatpush1.msra.mxu0 0.0
    %747 = vmatprep.subr.mxu0 0.0
    %748 = vmatpush1.msra.mxu0 0.0
    %749 = vmatprep.subr.mxu0 0.0
    %750 = vmatpush1.msra.mxu0 0.0
    %751 = vmatprep.subr.mxu0 0.0
    %752 = vmatpush1.msra.mxu0 0.0
    %753 = vmatprep.subr.mxu0 0.0
    %754 = vmatpush1.msra.mxu0 0.0
    %755 = vmatprep.subr.mxu0 0.0
    %756 = vmatpush1.msra.mxu0 0.0
    %757 = vmatprep.subr.mxu0 0.0
    %758 = vmatpush1.msra.mxu0 0.0
    %759 = vmatprep.subr.mxu0 0.0
    %760 = vmatpush1.msra.mxu0 0.0
    %761 = vmatprep.subr.mxu0 0.0
    %762 = vmatpush1.msra.mxu0 0.0
    %763 = vmatprep.subr.mxu0 0.0
    %764 = vmatpush1.msra.mxu0 0.0
    %765 = vmatprep.subr.mxu0 0.0
    %766 = vmatpush1.msra.mxu0 0.0
    %767 = vmatprep.subr.mxu0 0.0
    %768 = vmatpush1.msra.mxu0 0.0
    %769 = vmatprep.subr.mxu0 0.0
    %770 = vmatpush1.msra.mxu0 0.0
    %771 = vmatprep.mubr.f32.mxu0 0.0
    %772 = vmatmul.mubr.f32.gmra.mrb[0].mxu0 %v676
    %v773 = vpop.f32.mrb[0].mxu0
    %v774 = vadd.f32 %v705, %v773
    %v775 = vpop.f32.mrb[0].mxu0
    %776 = vmatprep.mubr.f32.mxu0 0.0
    %777 = vmatmul.mubr.f32.gmra.mrb[0].mxu0 %v677
    %v778 = vpop.f32.mrb[0].mxu0
    %v779 = vadd.f32 %v705, %v778
    %v780 = vpop.f32.mrb[0].mxu0
    %781 = vmatprep.mubr.f32.mxu0 0.0
    %782 = vmatmul.mubr.f32.gmra.mrb[0].mxu0 %v678
    %v783 = vpop.f32.mrb[0].mxu0
    %v784 = vadd.f32 %v705, %v783
    %v785 = vpop.f32.mrb[0].mxu0
    %786 = vmatprep.mubr.f32.mxu0 0.0
    %787 = vmatmul.mubr.f32.gmra.mrb[0].mxu0 %v679
    %v788 = vpop.f32.mrb[0].mxu0
    %v789 = vadd.f32 %v705, %v788
    %v790 = vpop.f32.mrb[0].mxu0
    %791 = vmatprep.mubr.f32.mxu0 0.0
    %792 = vmatmul.mubr.f32.gmra.mrb[0].mxu0 %v680
    %v793 = vpop.f32.mrb[0].mxu0
    %v794 = vadd.f32 %v705, %v793
    %v795 = vpop.f32.mrb[0].mxu0
    %796 = vmatprep.mubr.f32.mxu0 0.0
    %797 = vmatmul.mubr.f32.gmra.mrb[0].mxu0 %v681
    %v798 = vpop.f32.mrb[0].mxu0
    %v799 = vadd.f32 %v705, %v798
    %v800 = vpop.f32.mrb[0].mxu0
    %801 = vmatprep.mubr.f32.mxu0 0.0
    %802 = vmatmul.mubr.f32.gmra.mrb[0].mxu0 %v682
    %v803 = vpop.f32.mrb[0].mxu0
    %v804 = vadd.f32 %v705, %v803
    %v805 = vpop.f32.mrb[0].mxu0
    %806 = vmatprep.mubr.f32.mxu0 0.0
    %807 = vmatmul.mubr.f32.gmra.mrb[0].mxu0 %v683
    %v808 = vpop.f32.mrb[0].mxu0
    %v809 = vadd.f32 %v705, %v808
    %v810 = vpop.f32.mrb[0].mxu0
    %811 = vdwg.mxu0
    %v812 = vtanh.pop %v774
    %v813 = vtanh.pop %v779
    %v814 = vtanh.pop %v784
    %v815 = vtanh.pop %v789
    %v816 = vtanh.pop %v794
    %v817 = vtanh.pop %v799
    %v818 = vtanh.pop %v804
    %v819 = vtanh.pop %v809
    %820 = vst [vmem:[%s5] sm:$0xff] %v812
    %821 = vst [vmem:[%s5 + $0x8] sm:$0xff] %v813
    %822 = vst [vmem:[%s5 + $0x10] sm:$0xff] %v814
    %823 = vst [vmem:[%s5 + $0x18] sm:$0xff] %v815
    %824 = vst [vmem:[%s5 + $0x20] sm:$0xff] %v816
    %825 = vst [vmem:[%s5 + $0x28] sm:$0xff] %v817
    %826 = vst [vmem:[%s5 + $0x30] sm:$0xff] %v818
    %827 = vst [vmem:[%s5 + $0x38] sm:$0xff] %v819
    // Predicated region
    $region30: #{reservoir_controller_forward.1} parent=1 // pred_check
      %p828 = pneg %p36
    $region31: #{reservoir_controller_forward.1} parent=1 // pred_check_branch
      %830 = sbr.rel (%p828) target = $region33
    $region32: #{reservoir_controller_forward.1} parent=1 // pred_region
      %831 = vst [vmem:[%s6] sm:$0xff] %v673
    $region33: #{reservoir_controller_forward.1} parent=1 // pred_fallthru
      _
    // Predicated region
    $region34: #{reservoir_controller_forward.1} parent=1 // pred_check
      _
    $region35: #{reservoir_controller_forward.1} parent=1 // pred_check_branch
      %833 = sbr.rel (0) target = $region37
    $region36: #{reservoir_controller_forward.1} parent=1 // pred_region
      _
    $region37: #{reservoir_controller_forward.1} parent=1 // pred_fallthru
      _
    // Predicated region
    $region38: #{reservoir_controller_forward.1} parent=1 // pred_check
      _
    $region39: #{reservoir_controller_forward.1} parent=1 // pred_check_branch
      %835 = sbr.rel (0) target = $region41
    $region40: #{reservoir_controller_forward.1} parent=1 // pred_region
      _
    $region41: #{reservoir_controller_forward.1} parent=1 // pred_fallthru
      _
    // Predicated region
    $region42: #{reservoir_controller_forward.1} parent=1 // pred_check
      _
    $region43: #{reservoir_controller_forward.1} parent=1 // pred_check_branch
      %837 = sbr.rel (0) target = $region45
    $region44: #{reservoir_controller_forward.1} parent=1 // pred_region
      _
    $region45: #{reservoir_controller_forward.1} parent=1 // pred_fallthru
      _
    // Predicated region
    $region46: #{reservoir_controller_forward.1} parent=1 // pred_check
      _
    $region47: #{reservoir_controller_forward.1} parent=1 // pred_check_branch
      %839 = sbr.rel (0) target = $region49
    $region48: #{reservoir_controller_forward.1} parent=1 // pred_region
      _
    $region49: #{reservoir_controller_forward.1} parent=1 // pred_fallthru
      _
    %840 = vsyncpa [#allocation5], 1

</llo_original>
